<compile_context>
chip_gen: v6e
topology: v6e:2x2x1
jax: 0.10.0
libtpu: 0.0.40
codegen_flags: <defaults>
</compile_context>

<pallas_src>
import functools

import jax
import jax.numpy as jnp
from jax.experimental import pallas as pl
from jax.experimental.pallas import tpu as pltpu


# ----------------------------------------------------------------------------
# helpers
# ----------------------------------------------------------------------------
def _vmem_capacity_bytes():
    """Per-generation VMEM capacity (v5e/v6e: 128 MiB, v7x: 64 MiB)."""
    try:
        return int(pltpu.get_tpu_info().vmem_capacity_bytes)
    except Exception:  # pragma: no cover - conservative fallback (v7x)
        return 64 * 1024 * 1024


def _round_up(x, m):
    return -(-x // m) * m


# ----------------------------------------------------------------------------
# Kernel 1: fused mean of N loss tensors (torch.mean of each loss tensor)
# ----------------------------------------------------------------------------
def _fused_mean_kernel(*refs, n_losses, inv_counts):
    xs = refs[:n_losses]                 # inputs, (tm, C) blocks
    out_ref = refs[n_losses]             # (1, 128) f32, lane j = mean of loss j
    accs = refs[n_losses + 1:]           # n_losses x (tm, C) f32 VMEM scratch
    step = pl.program_id(0)

    @pl.when(step == 0)
    def _init():
        for a in accs:
            a[...] = jnp.zeros_like(a)

    # steady state: pure VPU elementwise accumulate (no XLU, no stores)
    for x, a in zip(xs, accs):
        a[...] += x[...].astype(jnp.float32)

    @pl.when(step == pl.num_programs(0) - 1)
    def _epilogue():
        lane = jax.lax.broadcasted_iota(jnp.int32, (1, 128), 1)
        out = jnp.zeros((1, 128), jnp.float32)
        for j, (a, inv_n) in enumerate(zip(accs, inv_counts)):
            s = jnp.sum(a[...], keepdims=True) * inv_n          # (1, 1)
            out = jnp.where(lane == j, jnp.broadcast_to(s, (1, 128)), out)
        out_ref[...] = out


def fused_means(tensors, *, max_tile_rows=1024):
    """Compute jnp.mean of each tensor in `tensors` with ONE pallas_call.

    Returns a list of scalar f32 values (one per tensor). Tensors may have
    arbitrary shapes/sizes; each is flattened and zero-padded to a shared
    lane-dense (R, C) slab and divided by its own true element count.
    """
    n_losses = len(tensors)
    assert 1 <= n_losses <= 128
    counts = [int(t.size) for t in tensors]
    max_n = max(counts)

    # wider lane-dense blocks for big tensors; 128 lanes for tiny ones
    C = 1024 if max_n >= 8 * 1024 else 128
    rows = _round_up(max(8, -(-max_n // C)), 8)

    # byte-based tile sizing: n inputs double-buffered + n f32 accumulators
    vmem_cap = _vmem_capacity_bytes()
    budget = vmem_cap // 3
    bytes_per_row = n_losses * (2 + 1) * C * 4
    tm = max(8, min(max_tile_rows, budget // bytes_per_row))
    tm = (tm // 8) * 8
    tm = min(tm, rows)
    rows_pad = _round_up(rows, tm)

    # host-side glue: flatten + zero-pad to (rows_pad, C) (zeros don't bias sums)
    padded = []
    for t in tensors:
        flat = jnp.ravel(t)
        flat = jnp.pad(flat, (0, rows_pad * C - flat.size))
        padded.append(flat.reshape(rows_pad, C))

    grid = (rows_pad // tm,)
    needed = n_losses * (2 + 1) * tm * C * 4 + (1 << 20)
    vmem_limit = int(min(max(needed, 32 << 20),
                         max(vmem_cap - (16 << 20), needed)))

    kernel = functools.partial(
        _fused_mean_kernel,
        n_losses=n_losses,
        inv_counts=tuple(1.0 / c for c in counts),
    )

    out = pl.pallas_call(
        kernel,
        out_shape=jax.ShapeDtypeStruct((1, 128), jnp.float32),
        grid_spec=pltpu.PrefetchScalarGridSpec(
            num_scalar_prefetch=0,
            grid=grid,
            in_specs=[pl.BlockSpec((tm, C), lambda i: (i, 0))
                      for _ in range(n_losses)],
            out_specs=pl.BlockSpec((1, 128), lambda i: (0, 0)),
            scratch_shapes=[pltpu.VMEM((tm, C), jnp.float32)
                            for _ in range(n_losses)],
        ),
        compiler_params=pltpu.CompilerParams(
            dimension_semantics=("arbitrary",),
            vmem_limit_bytes=vmem_limit,
        ),
    )(*padded)

    return [out[0, j] for j in range(n_losses)]


# ----------------------------------------------------------------------------
# Kernel 2: EMA parameter update  (update_average in the torch file)
# ----------------------------------------------------------------------------
def _ema_kernel(tgt_ref, src_ref, out_ref, *, beta):
    t = tgt_ref[...].astype(jnp.float32)
    s = src_ref[...].astype(jnp.float32)
    out_ref[...] = (beta * t + (1.0 - beta) * s).astype(out_ref.dtype)


def ema_update(p_tgt, p_src, beta=0.999, max_tile_rows=1024):
    """p_tgt, p_src: [R, C] with R % 8 == 0, C % 128 == 0.

    NOTE: p_tgt is donated (updated in place via input_output_aliases); do not
    reuse the passed-in p_tgt array after this call.
    """
    assert p_tgt.shape == p_src.shape and p_tgt.ndim == 2
    R, C = p_tgt.shape
    assert C % 128 == 0, "lane dim must be a multiple of 128"
    assert R % 8 == 0, "sublane dim must be a multiple of 8"

    itemsize = jnp.dtype(p_tgt.dtype).itemsize
    vmem_cap = _vmem_capacity_bytes()
    budget = vmem_cap // 3
    # 3 arrays (tgt, src, out) x 2 pipeline buffers resident per grid step
    bytes_per_row = 3 * 2 * C * itemsize
    tm = max(8, min(max_tile_rows, budget // bytes_per_row))
    tm = (tm // 8) * 8
    # keep >= 2 grid blocks when possible so v7x megacore can split the work
    if R >= 16:
        tm = min(tm, max(8, ((R // 2) // 8) * 8))
    tm = min(tm, R)

    grid = (pl.cdiv(R, tm),)
    needed = 3 * 2 * tm * C * itemsize + (1 << 20)
    vmem_limit = int(min(max(needed, 32 << 20),
                         max(vmem_cap - (16 << 20), needed)))

    return pl.pallas_call(
        functools.partial(_ema_kernel, beta=beta),
        out_shape=jax.ShapeDtypeStruct((R, C), p_tgt.dtype),
        grid_spec=pltpu.PrefetchScalarGridSpec(
            num_scalar_prefetch=0,
            grid=grid,
            in_specs=[pl.BlockSpec((tm, C), lambda i: (i, 0)),
                      pl.BlockSpec((tm, C), lambda i: (i, 0))],
            out_specs=pl.BlockSpec((tm, C), lambda i: (i, 0)),
        ),
        input_output_aliases={0: 0},  # update p_tgt in place (donated)
        compiler_params=pltpu.CompilerParams(
            dimension_semantics=("parallel",),
            vmem_limit_bytes=vmem_limit,
        ),
    )(p_tgt, p_src)


# ----------------------------------------------------------------------------
# GANTrainer wrapper (JAX side)
# ----------------------------------------------------------------------------
class GANTrainerPallas:
    def __init__(self, config, key):
        self.config = config
        # weights_init('gaussian'): N(0, 0.02) on conv/linear weights.
        # Parameters kept as flat 2D slabs [rows, 128].
        k_gen, k_dis = jax.random.split(key)
        self.gen_params = 0.02 * jax.random.normal(k_gen, (256, 128), jnp.float32)
        self.dis_params = 0.02 * jax.random.normal(k_dis, (256, 128), jnp.float32)
        # gen_test = copy.deepcopy(gen)  -> distinct buffer (required: EMA donates it)
        self.gen_test_params = jnp.copy(self.gen_params)

    def gen_update(self, al, ad, xr, cr, sr, ac):
        """Mirrors GANTrainer.gen_update loss bookkeeping + EMA update.
        All six torch.mean() reductions run in ONE fused pallas_call."""
        (self.loss_gen_total, self.loss_gen_adv, self.loss_gen_recon_x,
         self.loss_gen_recon_c, self.loss_gen_recon_s,
         self.accuracy_gen_adv) = fused_means([al, ad, xr, cr, sr, ac])
        # update_average(gen_test, gen, beta=0.999) -- in-place on gen_test
        self.gen_test_params = ema_update(self.gen_test_params,
                                          self.gen_params, beta=0.999)
        return self.accuracy_gen_adv

    def dis_update(self, al, lfa, lre, reg, acc, l_cls):
        (self.loss_dis_total, self.loss_dis_fake_adv, self.loss_dis_real_adv,
         self.loss_dis_reg, self.accuracy_dis_adv,
         self.loss_dis_cls) = fused_means([al, lfa, lre, reg, acc, l_cls])
        return self.accuracy_dis_adv

    def forward(self, *inputs):
        # torch forward is a no-op ("Forward function not implemented.")
        return None


if __name__ == "__main__":
    key = jax.random.PRNGKey(0)
    config = {"gan": {"lr_gen": 1e-4, "lr_dis": 1e-4,
                      "weight_decay": 1e-4, "init": "gaussian"}}
    trainer = GANTrainerPallas(config, key)

    # Synthetic BalaGAN outputs: six loss tensors per update, NCHW = (2, 4, 16, 16).
    ks = jax.random.split(jax.random.PRNGKey(1), 12)
    gen_losses = [jax.random.normal(k, (2, 4, 16, 16), jnp.float32) for k in ks[:6]]
    dis_losses = [jax.random.normal(k, (2, 4, 16, 16), jnp.float32) for k in ks[6:]]

    # Reference values. EMA reference is computed BEFORE the update because
    # ema_update donates (in-place-updates) gen_test_params.
    ref_gen_means = [jnp.mean(t) for t in gen_losses]
    ref_dis_means = [jnp.mean(t) for t in dis_losses]
    ref_ema = 0.999 * trainer.gen_test_params + 0.001 * trainer.gen_params
    ref_ema = jax.block_until_ready(ref_ema)

    acc_g = jax.block_until_ready(trainer.gen_update(*gen_losses))
    new_gen_test = jax.block_until_ready(trainer.gen_test_params)
    acc_d = jax.block_until_ready(trainer.dis_update(*dis_losses))

    got_gen = [trainer.loss_gen_total, trainer.loss_gen_adv,
               trainer.loss_gen_recon_x, trainer.loss_gen_recon_c,
               trainer.loss_gen_recon_s, trainer.accuracy_gen_adv]
    got_dis = [trainer.loss_dis_total, trainer.loss_dis_fake_adv,
               trainer.loss_dis_real_adv, trainer.loss_dis_reg,
               trainer.accuracy_dis_adv, trainer.loss_dis_cls]

    for r, g in zip(ref_gen_means, got_gen):
        assert jnp.allclose(r, g, atol=1e-5, rtol=1e-5), (r, g)
    for r, g in zip(ref_dis_means, got_dis):
        assert jnp.allclose(r, g, atol=1e-5, rtol=1e-5), (r, g)
    assert jnp.allclose(ref_ema, new_gen_test, atol=1e-6, rtol=1e-6)

    print("KERNEL_OK")
</pallas_src>

<mosaic_0001>
module attributes {stable_mosaic.version = 11 : i64} {
  func.func @_fused_mean_kernel(%arg0: i32, %arg1: memref<16x128xf32, #tpu.memory_space<vmem>>, %arg2: memref<16x128xf32, #tpu.memory_space<vmem>>, %arg3: memref<16x128xf32, #tpu.memory_space<vmem>>, %arg4: memref<16x128xf32, #tpu.memory_space<vmem>>, %arg5: memref<16x128xf32, #tpu.memory_space<vmem>>, %arg6: memref<16x128xf32, #tpu.memory_space<vmem>>, %arg7: memref<1x128xf32, #tpu.memory_space<vmem>>, %arg8: memref<16x128xf32, #tpu.memory_space<vmem>>, %arg9: memref<16x128xf32, #tpu.memory_space<vmem>>, %arg10: memref<16x128xf32, #tpu.memory_space<vmem>>, %arg11: memref<16x128xf32, #tpu.memory_space<vmem>>, %arg12: memref<16x128xf32, #tpu.memory_space<vmem>>, %arg13: memref<16x128xf32, #tpu.memory_space<vmem>>) attributes {dimension_semantics = [#tpu.dimension_semantics<arbitrary>], iteration_bounds = array<i64: 1>, scalar_prefetch = 0 : i64, scratch_operands = 6 : i64, tpu.core_type = #tpu.core_type<tc>, window_params = [{transform_indices = @transform_0, window_bounds = array<i64: 16, 128>}, {transform_indices = @transform_1, window_bounds = array<i64: 16, 128>}, {transform_indices = @transform_2, window_bounds = array<i64: 16, 128>}, {transform_indices = @transform_3, window_bounds = array<i64: 16, 128>}, {transform_indices = @transform_4, window_bounds = array<i64: 16, 128>}, {transform_indices = @transform_5, window_bounds = array<i64: 16, 128>}, {pipeline_mode = #tpu.pipeline_mode<synchronous>, transform_indices = @transform_6, window_bounds = array<i64: 1, 128>}]} {
    %c0_i32 = arith.constant 0 : i32
    %0 = arith.cmpi eq, %arg0, %c0_i32 : i32
    %1 = arith.extui %0 : i1 to i32
    %c0_i32_0 = arith.constant 0 : i32
    %2 = arith.cmpi ne, %1, %c0_i32_0 : i32
    scf.if %2 {
      %cst = arith.constant 0.000000e+00 : f32
      %30 = vector.broadcast %cst : f32 to vector<16x128xf32>
      %c0_38 = arith.constant 0 : index
      %c0_39 = arith.constant 0 : index
      %31 = vector.load %arg8[%c0_38, %c0_39] : memref<16x128xf32, #tpu.memory_space<vmem>>, vector<16x128xf32>
      tpu.vector_store %arg8[%c0_38, %c0_39], %30 {strides = array<i32>} : memref<16x128xf32, #tpu.memory_space<vmem>>, vector<16x128xf32>,
      %cst_40 = arith.constant 0.000000e+00 : f32
      %32 = vector.broadcast %cst_40 : f32 to vector<16x128xf32>
      %c0_41 = arith.constant 0 : index
      %c0_42 = arith.constant 0 : index
      %33 = vector.load %arg9[%c0_41, %c0_42] : memref<16x128xf32, #tpu.memory_space<vmem>>, vector<16x128xf32>
      tpu.vector_store %arg9[%c0_41, %c0_42], %32 {strides = array<i32>} : memref<16x128xf32, #tpu.memory_space<vmem>>, vector<16x128xf32>,
      %cst_43 = arith.constant 0.000000e+00 : f32
      %34 = vector.broadcast %cst_43 : f32 to vector<16x128xf32>
      %c0_44 = arith.constant 0 : index
      %c0_45 = arith.constant 0 : index
      %35 = vector.load %arg10[%c0_44, %c0_45] : memref<16x128xf32, #tpu.memory_space<vmem>>, vector<16x128xf32>
      tpu.vector_store %arg10[%c0_44, %c0_45], %34 {strides = array<i32>} : memref<16x128xf32, #tpu.memory_space<vmem>>, vector<16x128xf32>,
      %cst_46 = arith.constant 0.000000e+00 : f32
      %36 = vector.broadcast %cst_46 : f32 to vector<16x128xf32>
      %c0_47 = arith.constant 0 : index
      %c0_48 = arith.constant 0 : index
      %37 = vector.load %arg11[%c0_47, %c0_48] : memref<16x128xf32, #tpu.memory_space<vmem>>, vector<16x128xf32>
      tpu.vector_store %arg11[%c0_47, %c0_48], %36 {strides = array<i32>} : memref<16x128xf32, #tpu.memory_space<vmem>>, vector<16x128xf32>,
      %cst_49 = arith.constant 0.000000e+00 : f32
      %38 = vector.broadcast %cst_49 : f32 to vector<16x128xf32>
      %c0_50 = arith.constant 0 : index
      %c0_51 = arith.constant 0 : index
      %39 = vector.load %arg12[%c0_50, %c0_51] : memref<16x128xf32, #tpu.memory_space<vmem>>, vector<16x128xf32>
      tpu.vector_store %arg12[%c0_50, %c0_51], %38 {strides = array<i32>} : memref<16x128xf32, #tpu.memory_space<vmem>>, vector<16x128xf32>,
      %cst_52 = arith.constant 0.000000e+00 : f32
      %40 = vector.broadcast %cst_52 : f32 to vector<16x128xf32>
      %c0_53 = arith.constant 0 : index
      %c0_54 = arith.constant 0 : index
      %41 = vector.load %arg13[%c0_53, %c0_54] : memref<16x128xf32, #tpu.memory_space<vmem>>, vector<16x128xf32>
      tpu.vector_store %arg13[%c0_53, %c0_54], %40 {strides = array<i32>} : memref<16x128xf32, #tpu.memory_space<vmem>>, vector<16x128xf32>,
    } else {
    }
    %c0 = arith.constant 0 : index
    %c0_1 = arith.constant 0 : index
    %3 = vector.load %arg8[%c0, %c0_1] : memref<16x128xf32, #tpu.memory_space<vmem>>, vector<16x128xf32>
    %c0_2 = arith.constant 0 : index
    %c0_3 = arith.constant 0 : index
    %4 = vector.load %arg1[%c0_2, %c0_3] : memref<16x128xf32, #tpu.memory_space<vmem>>, vector<16x128xf32>
    %5 = arith.addf %3, %4 : vector<16x128xf32>
    %c0_4 = arith.constant 0 : index
    %c0_5 = arith.constant 0 : index
    %6 = vector.load %arg8[%c0_4, %c0_5] : memref<16x128xf32, #tpu.memory_space<vmem>>, vector<16x128xf32>
    tpu.vector_store %arg8[%c0_4, %c0_5], %5 {strides = array<i32>} : memref<16x128xf32, #tpu.memory_space<vmem>>, vector<16x128xf32>,
    %c0_6 = arith.constant 0 : index
    %c0_7 = arith.constant 0 : index
    %7 = vector.load %arg9[%c0_6, %c0_7] : memref<16x128xf32, #tpu.memory_space<vmem>>, vector<16x128xf32>
    %c0_8 = arith.constant 0 : index
    %c0_9 = arith.constant 0 : index
    %8 = vector.load %arg2[%c0_8, %c0_9] : memref<16x128xf32, #tpu.memory_space<vmem>>, vector<16x128xf32>
    %9 = arith.addf %7, %8 : vector<16x128xf32>
    %c0_10 = arith.constant 0 : index
    %c0_11 = arith.constant 0 : index
    %10 = vector.load %arg9[%c0_10, %c0_11] : memref<16x128xf32, #tpu.memory_space<vmem>>, vector<16x128xf32>
    tpu.vector_store %arg9[%c0_10, %c0_11], %9 {strides = array<i32>} : memref<16x128xf32, #tpu.memory_space<vmem>>, vector<16x128xf32>,
    %c0_12 = arith.constant 0 : index
    %c0_13 = arith.constant 0 : index
    %11 = vector.load %arg10[%c0_12, %c0_13] : memref<16x128xf32, #tpu.memory_space<vmem>>, vector<16x128xf32>
    %c0_14 = arith.constant 0 : index
    %c0_15 = arith.constant 0 : index
    %12 = vector.load %arg3[%c0_14, %c0_15] : memref<16x128xf32, #tpu.memory_space<vmem>>, vector<16x128xf32>
    %13 = arith.addf %11, %12 : vector<16x128xf32>
    %c0_16 = arith.constant 0 : index
    %c0_17 = arith.constant 0 : index
    %14 = vector.load %arg10[%c0_16, %c0_17] : memref<16x128xf32, #tpu.memory_space<vmem>>, vector<16x128xf32>
    tpu.vector_store %arg10[%c0_16, %c0_17], %13 {strides = array<i32>} : memref<16x128xf32, #tpu.memory_space<vmem>>, vector<16x128xf32>,
    %c0_18 = arith.constant 0 : index
    %c0_19 = arith.constant 0 : index
    %15 = vector.load %arg11[%c0_18, %c0_19] : memref<16x128xf32, #tpu.memory_space<vmem>>, vector<16x128xf32>
    %c0_20 = arith.constant 0 : index
    %c0_21 = arith.constant 0 : index
    %16 = vector.load %arg4[%c0_20, %c0_21] : memref<16x128xf32, #tpu.memory_space<vmem>>, vector<16x128xf32>
    %17 = arith.addf %15, %16 : vector<16x128xf32>
    %c0_22 = arith.constant 0 : index
    %c0_23 = arith.constant 0 : index
    %18 = vector.load %arg11[%c0_22, %c0_23] : memref<16x128xf32, #tpu.memory_space<vmem>>, vector<16x128xf32>
    tpu.vector_store %arg11[%c0_22, %c0_23], %17 {strides = array<i32>} : memref<16x128xf32, #tpu.memory_space<vmem>>, vector<16x128xf32>,
    %c0_24 = arith.constant 0 : index
    %c0_25 = arith.constant 0 : index
    %19 = vector.load %arg12[%c0_24, %c0_25] : memref<16x128xf32, #tpu.memory_space<vmem>>, vector<16x128xf32>
    %c0_26 = arith.constant 0 : index
    %c0_27 = arith.constant 0 : index
    %20 = vector.load %arg5[%c0_26, %c0_27] : memref<16x128xf32, #tpu.memory_space<vmem>>, vector<16x128xf32>
    %21 = arith.addf %19, %20 : vector<16x128xf32>
    %c0_28 = arith.constant 0 : index
    %c0_29 = arith.constant 0 : index
    %22 = vector.load %arg12[%c0_28, %c0_29] : memref<16x128xf32, #tpu.memory_space<vmem>>, vector<16x128xf32>
    tpu.vector_store %arg12[%c0_28, %c0_29], %21 {strides = array<i32>} : memref<16x128xf32, #tpu.memory_space<vmem>>, vector<16x128xf32>,
    %c0_30 = arith.constant 0 : index
    %c0_31 = arith.constant 0 : index
    %23 = vector.load %arg13[%c0_30, %c0_31] : memref<16x128xf32, #tpu.memory_space<vmem>>, vector<16x128xf32>
    %c0_32 = arith.constant 0 : index
    %c0_33 = arith.constant 0 : index
    %24 = vector.load %arg6[%c0_32, %c0_33] : memref<16x128xf32, #tpu.memory_space<vmem>>, vector<16x128xf32>
    %25 = arith.addf %23, %24 : vector<16x128xf32>
    %c0_34 = arith.constant 0 : index
    %c0_35 = arith.constant 0 : index
    %26 = vector.load %arg13[%c0_34, %c0_35] : memref<16x128xf32, #tpu.memory_space<vmem>>, vector<16x128xf32>
    tpu.vector_store %arg13[%c0_34, %c0_35], %25 {strides = array<i32>} : memref<16x128xf32, #tpu.memory_space<vmem>>, vector<16x128xf32>,
    %c0_i32_36 = arith.constant 0 : i32
    %27 = arith.cmpi eq, %arg0, %c0_i32_36 : i32
    %28 = arith.extui %27 : i1 to i32
    %c0_i32_37 = arith.constant 0 : i32
    %29 = arith.cmpi ne, %28, %c0_i32_37 : i32
    scf.if %29 {
      %30 = tpu.iota {dimensions = array<i32: 1>} : vector<1x128xi32>
      %cst = arith.constant 0.000000e+00 : f32
      %31 = vector.broadcast %cst : f32 to vector<1x128xf32>
      %c0_38 = arith.constant 0 : index
      %c0_39 = arith.constant 0 : index
      %32 = vector.load %arg8[%c0_38, %c0_39] : memref<16x128xf32, #tpu.memory_space<vmem>>, vector<16x128xf32>
      %33 = vector.shape_cast %32 : vector<16x128xf32> to vector<1x16x128xf32>
      %cst_40 = arith.constant dense<0.000000e+00> : vector<1xf32>
      %34 = vector.multi_reduction <add>, %33, %cst_40 [1, 2] : vector<1x16x128xf32> to vector<1xf32>
      %35 = vector.shape_cast %34 : vector<1xf32> to vector<1x1x1xf32>
      %36 = vector.extract %35[0, 0, 0] : f32 from vector<1x1x1xf32>
      %37 = vector.broadcast %36 : f32 to vector<1x1xf32>
      %cst_41 = arith.constant 4.8828125E-4 : f32
      %38 = vector.broadcast %cst_41 : f32 to vector<1x1xf32>
      %39 = arith.mulf %37, %38 : vector<1x1xf32>
      %c0_i32_42 = arith.constant 0 : i32
      %40 = vector.broadcast %c0_i32_42 : i32 to vector<1x128xi32>
      %41 = arith.cmpi eq, %30, %40 : vector<1x128xi32>
      %42 = vector.shape_cast %39 : vector<1x1xf32> to vector<1x1xf32>
      %43 = vector.broadcast %42 : vector<1x1xf32> to vector<1x128xf32>
      %44 = arith.select %41, %43, %31 : vector<1x128xi1>, vector<1x128xf32>
      %c0_43 = arith.constant 0 : index
      %c0_44 = arith.constant 0 : index
      %45 = vector.load %arg9[%c0_43, %c0_44] : memref<16x128xf32, #tpu.memory_space<vmem>>, vector<16x128xf32>
      %46 = vector.shape_cast %45 : vector<16x128xf32> to vector<1x16x128xf32>
      %cst_45 = arith.constant dense<0.000000e+00> : vector<1xf32>
      %47 = vector.multi_reduction <add>, %46, %cst_45 [1, 2] : vector<1x16x128xf32> to vector<1xf32>
      %48 = vector.shape_cast %47 : vector<1xf32> to vector<1x1x1xf32>
      %49 = vector.extract %48[0, 0, 0] : f32 from vector<1x1x1xf32>
      %50 = vector.broadcast %49 : f32 to vector<1x1xf32>
      %cst_46 = arith.constant 4.8828125E-4 : f32
      %51 = vector.broadcast %cst_46 : f32 to vector<1x1xf32>
      %52 = arith.mulf %50, %51 : vector<1x1xf32>
      %c1_i32 = arith.constant 1 : i32
      %53 = vector.broadcast %c1_i32 : i32 to vector<1x128xi32>
      %54 = arith.cmpi eq, %30, %53 : vector<1x128xi32>
      %55 = vector.shape_cast %52 : vector<1x1xf32> to vector<1x1xf32>
      %56 = vector.broadcast %55 : vector<1x1xf32> to vector<1x128xf32>
      %57 = arith.select %54, %56, %44 : vector<1x128xi1>, vector<1x128xf32>
      %c0_47 = arith.constant 0 : index
      %c0_48 = arith.constant 0 : index
      %58 = vector.load %arg10[%c0_47, %c0_48] : memref<16x128xf32, #tpu.memory_space<vmem>>, vector<16x128xf32>
      %59 = vector.shape_cast %58 : vector<16x128xf32> to vector<1x16x128xf32>
      %cst_49 = arith.constant dense<0.000000e+00> : vector<1xf32>
      %60 = vector.multi_reduction <add>, %59, %cst_49 [1, 2] : vector<1x16x128xf32> to vector<1xf32>
      %61 = vector.shape_cast %60 : vector<1xf32> to vector<1x1x1xf32>
      %62 = vector.extract %61[0, 0, 0] : f32 from vector<1x1x1xf32>
      %63 = vector.broadcast %62 : f32 to vector<1x1xf32>
      %cst_50 = arith.constant 4.8828125E-4 : f32
      %64 = vector.broadcast %cst_50 : f32 to vector<1x1xf32>
      %65 = arith.mulf %63, %64 : vector<1x1xf32>
      %c2_i32 = arith.constant 2 : i32
      %66 = vector.broadcast %c2_i32 : i32 to vector<1x128xi32>
      %67 = arith.cmpi eq, %30, %66 : vector<1x128xi32>
      %68 = vector.shape_cast %65 : vector<1x1xf32> to vector<1x1xf32>
      %69 = vector.broadcast %68 : vector<1x1xf32> to vector<1x128xf32>
      %70 = arith.select %67, %69, %57 : vector<1x128xi1>, vector<1x128xf32>
      %c0_51 = arith.constant 0 : index
      %c0_52 = arith.constant 0 : index
      %71 = vector.load %arg11[%c0_51, %c0_52] : memref<16x128xf32, #tpu.memory_space<vmem>>, vector<16x128xf32>
      %72 = vector.shape_cast %71 : vector<16x128xf32> to vector<1x16x128xf32>
      %cst_53 = arith.constant dense<0.000000e+00> : vector<1xf32>
      %73 = vector.multi_reduction <add>, %72, %cst_53 [1, 2] : vector<1x16x128xf32> to vector<1xf32>
      %74 = vector.shape_cast %73 : vector<1xf32> to vector<1x1x1xf32>
      %75 = vector.extract %74[0, 0, 0] : f32 from vector<1x1x1xf32>
      %76 = vector.broadcast %75 : f32 to vector<1x1xf32>
      %cst_54 = arith.constant 4.8828125E-4 : f32
      %77 = vector.broadcast %cst_54 : f32 to vector<1x1xf32>
      %78 = arith.mulf %76, %77 : vector<1x1xf32>
      %c3_i32 = arith.constant 3 : i32
      %79 = vector.broadcast %c3_i32 : i32 to vector<1x128xi32>
      %80 = arith.cmpi eq, %30, %79 : vector<1x128xi32>
      %81 = vector.shape_cast %78 : vector<1x1xf32> to vector<1x1xf32>
      %82 = vector.broadcast %81 : vector<1x1xf32> to vector<1x128xf32>
      %83 = arith.select %80, %82, %70 : vector<1x128xi1>, vector<1x128xf32>
      %c0_55 = arith.constant 0 : index
      %c0_56 = arith.constant 0 : index
      %84 = vector.load %arg12[%c0_55, %c0_56] : memref<16x128xf32, #tpu.memory_space<vmem>>, vector<16x128xf32>
      %85 = vector.shape_cast %84 : vector<16x128xf32> to vector<1x16x128xf32>
      %cst_57 = arith.constant dense<0.000000e+00> : vector<1xf32>
      %86 = vector.multi_reduction <add>, %85, %cst_57 [1, 2] : vector<1x16x128xf32> to vector<1xf32>
      %87 = vector.shape_cast %86 : vector<1xf32> to vector<1x1x1xf32>
      %88 = vector.extract %87[0, 0, 0] : f32 from vector<1x1x1xf32>
      %89 = vector.broadcast %88 : f32 to vector<1x1xf32>
      %cst_58 = arith.constant 4.8828125E-4 : f32
      %90 = vector.broadcast %cst_58 : f32 to vector<1x1xf32>
      %91 = arith.mulf %89, %90 : vector<1x1xf32>
      %c4_i32 = arith.constant 4 : i32
      %92 = vector.broadcast %c4_i32 : i32 to vector<1x128xi32>
      %93 = arith.cmpi eq, %30, %92 : vector<1x128xi32>
      %94 = vector.shape_cast %91 : vector<1x1xf32> to vector<1x1xf32>
      %95 = vector.broadcast %94 : vector<1x1xf32> to vector<1x128xf32>
      %96 = arith.select %93, %95, %83 : vector<1x128xi1>, vector<1x128xf32>
      %c0_59 = arith.constant 0 : index
      %c0_60 = arith.constant 0 : index
      %97 = vector.load %arg13[%c0_59, %c0_60] : memref<16x128xf32, #tpu.memory_space<vmem>>, vector<16x128xf32>
      %98 = vector.shape_cast %97 : vector<16x128xf32> to vector<1x16x128xf32>
      %cst_61 = arith.constant dense<0.000000e+00> : vector<1xf32>
      %99 = vector.multi_reduction <add>, %98, %cst_61 [1, 2] : vector<1x16x128xf32> to vector<1xf32>
      %100 = vector.shape_cast %99 : vector<1xf32> to vector<1x1x1xf32>
      %101 = vector.extract %100[0, 0, 0] : f32 from vector<1x1x1xf32>
      %102 = vector.broadcast %101 : f32 to vector<1x1xf32>
      %cst_62 = arith.constant 4.8828125E-4 : f32
      %103 = vector.broadcast %cst_62 : f32 to vector<1x1xf32>
      %104 = arith.mulf %102, %103 : vector<1x1xf32>
      %c5_i32 = arith.constant 5 : i32
      %105 = vector.broadcast %c5_i32 : i32 to vector<1x128xi32>
      %106 = arith.cmpi eq, %30, %105 : vector<1x128xi32>
      %107 = vector.shape_cast %104 : vector<1x1xf32> to vector<1x1xf32>
      %108 = vector.broadcast %107 : vector<1x1xf32> to vector<1x128xf32>
      %109 = arith.select %106, %108, %96 : vector<1x128xi1>, vector<1x128xf32>
      %c0_63 = arith.constant 0 : index
      %c0_64 = arith.constant 0 : index
      %110 = vector.load %arg7[%c0_63, %c0_64] : memref<1x128xf32, #tpu.memory_space<vmem>>, vector<1x128xf32>
      tpu.vector_store %arg7[%c0_63, %c0_64], %109 {strides = array<i32>} : memref<1x128xf32, #tpu.memory_space<vmem>>, vector<1x128xf32>,
    } else {
    }
    return
  }
  func.func @transform_0(%arg0: i32) -> (i32, i32) {
    %c0_i32 = arith.constant 0 : i32
    %c0_i32_0 = arith.constant 0 : i32
    return %arg0, %c0_i32 : i32, i32
  }
  func.func @transform_1(%arg0: i32) -> (i32, i32) {
    %c0_i32 = arith.constant 0 : i32
    %c0_i32_0 = arith.constant 0 : i32
    return %arg0, %c0_i32 : i32, i32
  }
  func.func @transform_2(%arg0: i32) -> (i32, i32) {
    %c0_i32 = arith.constant 0 : i32
    %c0_i32_0 = arith.constant 0 : i32
    return %arg0, %c0_i32 : i32, i32
  }
  func.func @transform_3(%arg0: i32) -> (i32, i32) {
    %c0_i32 = arith.constant 0 : i32
    %c0_i32_0 = arith.constant 0 : i32
    return %arg0, %c0_i32 : i32, i32
  }
  func.func @transform_4(%arg0: i32) -> (i32, i32) {
    %c0_i32 = arith.constant 0 : i32
    %c0_i32_0 = arith.constant 0 : i32
    return %arg0, %c0_i32 : i32, i32
  }
  func.func @transform_5(%arg0: i32) -> (i32, i32) {
    %c0_i32 = arith.constant 0 : i32
    %c0_i32_0 = arith.constant 0 : i32
    return %arg0, %c0_i32 : i32, i32
  }
  func.func @transform_6(%arg0: i32) -> (i32, i32) {
    %c0_i32 = arith.constant 0 : i32
    %c0_i32_0 = arith.constant 0 : i32
    %c0_i32_1 = arith.constant 0 : i32
    return %c0_i32, %c0_i32_0 : i32, i32
  }
}

</mosaic_0001>

<llo_original>
// kernel: tpu_custom_call.1
$region0: #{tpu_custom_call.1}
  #allocation0 [shape = 'u32[]', space=smem, size = 0x4, offset = 0x4, fixed_abs, tag = 'smem constant byte address 0x4 - core index']
  #allocation1 [shape = 'u32[144,128]{1,0:T(1,128)}', space=vmem, size = 0x12000, scoped, tag = 'internal scratch']
  #allocation2 [shape = 'f32[16,128]{1,0:T(8,128)}', space=vmem, size = 0x2000, scoped, tag = 'scratch operand']
  #allocation3 [shape = 'f32[16,128]{1,0:T(8,128)}', space=vmem, size = 0x2000, scoped, tag = 'scratch operand']
  #allocation4 [shape = 'f32[16,128]{1,0:T(8,128)}', space=vmem, size = 0x2000, scoped, tag = 'scratch operand']
  #allocation5 [shape = 'f32[16,128]{1,0:T(8,128)}', space=vmem, size = 0x2000, scoped, tag = 'scratch operand']
  #allocation6 [shape = 'f32[16,128]{1,0:T(8,128)}', space=vmem, size = 0x2000, scoped, tag = 'scratch operand']
  #allocation7 [shape = 'f32[16,128]{1,0:T(8,128)}', space=vmem, size = 0x2000, scoped, tag = 'scratch operand']
  %s0 = inlined_call_operand.hbm [shape: f32[16,128], index: 0, kind: input, shape index: {}]
  %s1 = inlined_call_operand.hbm [shape: f32[16,128], index: 1, kind: input, shape index: {}]
  %s2 = inlined_call_operand.hbm [shape: f32[16,128], index: 2, kind: input, shape index: {}]
  %s3 = inlined_call_operand.hbm [shape: f32[16,128], index: 3, kind: input, shape index: {}]
  %s4 = inlined_call_operand.hbm [shape: f32[16,128], index: 4, kind: input, shape index: {}]
  %s5 = inlined_call_operand.hbm [shape: f32[16,128], index: 5, kind: input, shape index: {}]
  %s6 = inlined_call_operand.hbm [shape: f32[1,128], index: 6, kind: output, shape index: {}]
  %s7 = sld [smem:[#allocation0]]
  $region66: #{tpu_custom_call.1} parent=0
    _
  %s9 = ssub.s32 1, %s7
  %s10 = scalar_select 0, %s9, %s7
  $region1: #{tpu_custom_call.1} parent=0
    #allocation8 [shape = 'u8[8192]{0}', space=vmem, size = 0x2000, scoped, tag = 'input window, operand 0, single buffered']
    #allocation9 [shape = 's32[1]{0}', space=sflag, size = 0x4, scoped, tag = 'scoped memory for tpu_custom_call.1']
    #allocation10 [shape = 's32[1]{0}', space=sflag, size = 0x4, scoped, tag = 'scoped memory for tpu_custom_call.1']
    #allocation11 [shape = 'u8[8192]{0}', space=vmem, size = 0x2000, scoped, tag = 'input window, operand 1, single buffered']
    #allocation12 [shape = 's32[1]{0}', space=sflag, size = 0x4, scoped, tag = 'scoped memory for tpu_custom_call.1']
    #allocation13 [shape = 'u8[8192]{0}', space=vmem, size = 0x2000, scoped, tag = 'input window, operand 2, single buffered']
    #allocation14 [shape = 'u8[8192]{0}', space=vmem, size = 0x2000, scoped, tag = 'input window, operand 3, single buffered']
    #allocation15 [shape = 's32[1]{0}', space=sflag, size = 0x4, scoped, tag = 'scoped memory for tpu_custom_call.1']
    #allocation16 [shape = 'u8[8192]{0}', space=vmem, size = 0x2000, scoped, tag = 'input window, operand 4, single buffered']
    #allocation17 [shape = 'u8[8192]{0}', space=vmem, size = 0x2000, scoped, tag = 'input window, operand 5, single buffered']
    #allocation18 [shape = 's32[1]{0}', space=sflag, size = 0x4, scoped, tag = 'scoped memory for tpu_custom_call.1']
    #allocation19 [shape = 'u8[512]{0}', space=vmem, size = 0x400, scoped, tag = 'output window, operand 0, single buffered']
    %11 = vsyncpa [#allocation9], 0
    %12 = vsyncpa [#allocation12], 0
    %13 = vsyncpa [#allocation15], 0
    %14 = vsyncpa [#allocation18], 0
    %15 = vsyncpa [#allocation10], 0
    // Predicated region
    $region2: #{tpu_custom_call.1} parent=1 // pred_check
      _
    $region3: #{tpu_custom_call.1} parent=1 // pred_check_branch
      %17 = sbr.rel (0) target = $region5
    $region4: #{tpu_custom_call.1} parent=1 // pred_region
      %s19 = ssub.s32 256, 256
      %20 = vsyncadd [#allocation9], %s19
      %s21 = sshll.u32 [#allocation8], 4
      %s22 = int_to_ptr.vmem [resolvable:$true] %s21
      %27 = dma.hbm_to_vmem [thread:$0]  %s0, 256, %s22, [#allocation9], 128, 128, 8
    $region5: #{tpu_custom_call.1} parent=1 // pred_fallthru
      _
    // Predicated region
    $region6: #{tpu_custom_call.1} parent=1 // pred_check
      _
    $region7: #{tpu_custom_call.1} parent=1 // pred_check_branch
      %29 = sbr.rel (0) target = $region9
    $region8: #{tpu_custom_call.1} parent=1 // pred_region
      %s31 = ssub.s32 256, 256
      %32 = vsyncadd [#allocation12], %s31
      %s33 = sshll.u32 [#allocation11], 4
      %s34 = int_to_ptr.vmem [resolvable:$true] %s33
      %39 = dma.hbm_to_vmem [thread:$0]  %s1, 256, %s34, [#allocation12], 128, 128, 8
    $region9: #{tpu_custom_call.1} parent=1 // pred_fallthru
      _
    // Predicated region
    $region10: #{tpu_custom_call.1} parent=1 // pred_check
      _
    $region11: #{tpu_custom_call.1} parent=1 // pred_check_branch
      %41 = sbr.rel (0) target = $region13
    $region12: #{tpu_custom_call.1} parent=1 // pred_region
      %s43 = ssub.s32 256, 256
      %44 = vsyncadd [#allocation12], %s43
      %s45 = sshll.u32 [#allocation13], 4
      %s46 = int_to_ptr.vmem [resolvable:$true] %s45
      %51 = dma.hbm_to_vmem [thread:$0]  %s2, 256, %s46, [#allocation12], 128, 128, 8
    $region13: #{tpu_custom_call.1} parent=1 // pred_fallthru
      _
    // Predicated region
    $region14: #{tpu_custom_call.1} parent=1 // pred_check
      _
    $region15: #{tpu_custom_call.1} parent=1 // pred_check_branch
      %53 = sbr.rel (0) target = $region17
    $region16: #{tpu_custom_call.1} parent=1 // pred_region
      %s55 = ssub.s32 256, 256
      %56 = vsyncadd [#allocation15], %s55
      %s57 = sshll.u32 [#allocation14], 4
      %s58 = int_to_ptr.vmem [resolvable:$true] %s57
      %63 = dma.hbm_to_vmem [thread:$0]  %s3, 256, %s58, [#allocation15], 128, 128, 8
    $region17: #{tpu_custom_call.1} parent=1 // pred_fallthru
      _
    // Predicated region
    $region18: #{tpu_custom_call.1} parent=1 // pred_check
      _
    $region19: #{tpu_custom_call.1} parent=1 // pred_check_branch
      %65 = sbr.rel (0) target = $region21
    $region20: #{tpu_custom_call.1} parent=1 // pred_region
      %s67 = ssub.s32 256, 256
      %68 = vsyncadd [#allocation15], %s67
      %s69 = sshll.u32 [#allocation16], 4
      %s70 = int_to_ptr.vmem [resolvable:$true] %s69
      %75 = dma.hbm_to_vmem [thread:$0]  %s4, 256, %s70, [#allocation15], 128, 128, 8
    $region21: #{tpu_custom_call.1} parent=1 // pred_fallthru
      _
    // Predicated region
    $region22: #{tpu_custom_call.1} parent=1 // pred_check
      _
    $region23: #{tpu_custom_call.1} parent=1 // pred_check_branch
      %77 = sbr.rel (0) target = $region25
    $region24: #{tpu_custom_call.1} parent=1 // pred_region
      %s79 = ssub.s32 256, 256
      %80 = vsyncadd [#allocation18], %s79
      %s81 = sshll.u32 [#allocation17], 4
      %s82 = int_to_ptr.vmem [resolvable:$true] %s81
      %87 = dma.hbm_to_vmem [thread:$0]  %s5, 256, %s82, [#allocation18], 128, 128, 8
    $region25: #{tpu_custom_call.1} parent=1 // pred_fallthru
      _
    // Predicated region
    $region26: #{tpu_custom_call.1} parent=1 // pred_check
      _
    $region27: #{tpu_custom_call.1} parent=1 // pred_check_branch
      %89 = sbr.rel (0) target = $region29
    $region28: #{tpu_custom_call.1} parent=1 // pred_region
      %90 = dma.done [#allocation9], 256
    $region29: #{tpu_custom_call.1} parent=1 // pred_fallthru
      _
    // Predicated region
    $region30: #{tpu_custom_call.1} parent=1 // pred_check
      _
    $region31: #{tpu_custom_call.1} parent=1 // pred_check_branch
      %92 = sbr.rel (0) target = $region33
    $region32: #{tpu_custom_call.1} parent=1 // pred_region
      %93 = dma.done [#allocation12], 256
    $region33: #{tpu_custom_call.1} parent=1 // pred_fallthru
      _
    // Predicated region
    $region34: #{tpu_custom_call.1} parent=1 // pred_check
      _
    $region35: #{tpu_custom_call.1} parent=1 // pred_check_branch
      %95 = sbr.rel (0) target = $region37
    $region36: #{tpu_custom_call.1} parent=1 // pred_region
      %96 = dma.done [#allocation12], 256
    $region37: #{tpu_custom_call.1} parent=1 // pred_fallthru
      _
    // Predicated region
    $region38: #{tpu_custom_call.1} parent=1 // pred_check
      _
    $region39: #{tpu_custom_call.1} parent=1 // pred_check_branch
      %98 = sbr.rel (0) target = $region41
    $region40: #{tpu_custom_call.1} parent=1 // pred_region
      %99 = dma.done [#allocation15], 256
    $region41: #{tpu_custom_call.1} parent=1 // pred_fallthru
      _
    // Predicated region
    $region42: #{tpu_custom_call.1} parent=1 // pred_check
      _
    $region43: #{tpu_custom_call.1} parent=1 // pred_check_branch
      %101 = sbr.rel (0) target = $region45
    $region44: #{tpu_custom_call.1} parent=1 // pred_region
      %102 = dma.done [#allocation15], 256
    $region45: #{tpu_custom_call.1} parent=1 // pred_fallthru
      _
    // Predicated region
    $region46: #{tpu_custom_call.1} parent=1 // pred_check
      _
    $region47: #{tpu_custom_call.1} parent=1 // pred_check_branch
      %104 = sbr.rel (0) target = $region49
    $region48: #{tpu_custom_call.1} parent=1 // pred_region
      %105 = dma.done [#allocation18], 256
    $region49: #{tpu_custom_call.1} parent=1 // pred_fallthru
      _
    %p106 = scmp.eq.s32.totalorder 0, 0
    // Predicated region
    $region50: #{tpu_custom_call.1} parent=1 // pred_check
      %p107 = pneg %p106
    $region51: #{tpu_custom_call.1} parent=1 // pred_check_branch
      %109 = sbr.rel (%p107) target = $region53
    $region52: #{tpu_custom_call.1} parent=1 // pred_region
      %110 = vst [vmem:[#allocation2] sm:$0xff] 0.0
      %111 = vst [vmem:[#allocation2 + $0x8] sm:$0xff] 0.0
      %112 = vst [vmem:[#allocation3] sm:$0xff] 0.0
      %113 = vst [vmem:[#allocation3 + $0x8] sm:$0xff] 0.0
      %114 = vst [vmem:[#allocation4] sm:$0xff] 0.0
      %115 = vst [vmem:[#allocation4 + $0x8] sm:$0xff] 0.0
      %116 = vst [vmem:[#allocation5] sm:$0xff] 0.0
      %117 = vst [vmem:[#allocation5 + $0x8] sm:$0xff] 0.0
      %118 = vst [vmem:[#allocation6] sm:$0xff] 0.0
      %119 = vst [vmem:[#allocation6 + $0x8] sm:$0xff] 0.0
      %120 = vst [vmem:[#allocation7] sm:$0xff] 0.0
      %121 = vst [vmem:[#allocation7 + $0x8] sm:$0xff] 0.0
    $region53: #{tpu_custom_call.1} parent=1 // pred_fallthru
      _
    %v122 = vld [vmem:[#allocation2] sm:$0xff]
    %v123 = vld [vmem:[#allocation2 + $0x8] sm:$0xff]
    %v124 = vld [vmem:[#allocation8] sm:$0xff]
    %v125 = vld [vmem:[#allocation8 + $0x8] sm:$0xff]
    %v126 = vadd.f32 %v122, %v124
    %v127 = vadd.f32 %v123, %v125
    %128 = vst [vmem:[#allocation2] sm:$0xff] %v126
    %129 = vst [vmem:[#allocation2 + $0x8] sm:$0xff] %v127
    %v130 = vld [vmem:[#allocation3] sm:$0xff]
    %v131 = vld [vmem:[#allocation3 + $0x8] sm:$0xff]
    %v132 = vld [vmem:[#allocation11] sm:$0xff]
    %v133 = vld [vmem:[#allocation11 + $0x8] sm:$0xff]
    %v134 = vadd.f32 %v130, %v132
    %v135 = vadd.f32 %v131, %v133
    %136 = vst [vmem:[#allocation3] sm:$0xff] %v134
    %137 = vst [vmem:[#allocation3 + $0x8] sm:$0xff] %v135
    %v138 = vld [vmem:[#allocation4] sm:$0xff]
    %v139 = vld [vmem:[#allocation4 + $0x8] sm:$0xff]
    %v140 = vld [vmem:[#allocation13] sm:$0xff]
    %v141 = vld [vmem:[#allocation13 + $0x8] sm:$0xff]
    %v142 = vadd.f32 %v138, %v140
    %v143 = vadd.f32 %v139, %v141
    %144 = vst [vmem:[#allocation4] sm:$0xff] %v142
    %145 = vst [vmem:[#allocation4 + $0x8] sm:$0xff] %v143
    %v146 = vld [vmem:[#allocation5] sm:$0xff]
    %v147 = vld [vmem:[#allocation5 + $0x8] sm:$0xff]
    %v148 = vld [vmem:[#allocation14] sm:$0xff]
    %v149 = vld [vmem:[#allocation14 + $0x8] sm:$0xff]
    %v150 = vadd.f32 %v146, %v148
    %v151 = vadd.f32 %v147, %v149
    %152 = vst [vmem:[#allocation5] sm:$0xff] %v150
    %153 = vst [vmem:[#allocation5 + $0x8] sm:$0xff] %v151
    %v154 = vld [vmem:[#allocation6] sm:$0xff]
    %v155 = vld [vmem:[#allocation6 + $0x8] sm:$0xff]
    %v156 = vld [vmem:[#allocation16] sm:$0xff]
    %v157 = vld [vmem:[#allocation16 + $0x8] sm:$0xff]
    %v158 = vadd.f32 %v154, %v156
    %v159 = vadd.f32 %v155, %v157
    %160 = vst [vmem:[#allocation6] sm:$0xff] %v158
    %161 = vst [vmem:[#allocation6 + $0x8] sm:$0xff] %v159
    %v162 = vld [vmem:[#allocation7] sm:$0xff]
    %v163 = vld [vmem:[#allocation7 + $0x8] sm:$0xff]
    %v164 = vld [vmem:[#allocation17] sm:$0xff]
    %v165 = vld [vmem:[#allocation17 + $0x8] sm:$0xff]
    %v166 = vadd.f32 %v162, %v164
    %v167 = vadd.f32 %v163, %v165
    %168 = vst [vmem:[#allocation7] sm:$0xff] %v166
    %169 = vst [vmem:[#allocation7 + $0x8] sm:$0xff] %v167
    // Predicated region
    $region54: #{tpu_custom_call.1} parent=1 // pred_check
      %p170 = pneg %p106
    $region55: #{tpu_custom_call.1} parent=1 // pred_check_branch
      %172 = sbr.rel (%p170) target = $region57
    $region56: #{tpu_custom_call.1} parent=1 // pred_region
      %v173 = vlaneseq
      %v174 = vand.u32 %v173, 127
      %v175 = vld [vmem:[#allocation2] sm:$0xff]
      %v176 = vld [vmem:[#allocation2 + $0x8] sm:$0xff]
      %v177 = vadd.f32 %v175, %v176
      %178 = vadd.xlane.f32.xlu0 %v177
      %v179 = vpop.xlane.xlu0 %178
      %v180 = vrot.slane %v179, 4
      %v181 = vadd.f32 %v179, %v180
      %v182 = vrot.slane %v181, 2
      %v183 = vadd.f32 %v181, %v182
      %v184 = vrot.slane %v183, 1
      %v185 = vadd.f32 %v183, %v184
      %s186 = vtos %v185
      %v187 = vstv %s186
      %v188 = vmul.f32 %v187, 0.00048828125
      %vm189 = vcmp.eq.s32.totalorder %v174, 0
      %v190 = vsel %vm189, %v188, 0.0
      %v191 = vld [vmem:[#allocation3] sm:$0xff]
      %v192 = vld [vmem:[#allocation3 + $0x8] sm:$0xff]
      %v193 = vadd.f32 %v191, %v192
      %194 = vadd.xlane.f32.xlu0 %v193
      %v195 = vpop.xlane.xlu0 %194
      %v196 = vrot.slane %v195, 4
      %v197 = vadd.f32 %v195, %v196
      %v198 = vrot.slane %v197, 2
      %v199 = vadd.f32 %v197, %v198
      %v200 = vrot.slane %v199, 1
      %v201 = vadd.f32 %v199, %v200
      %s202 = vtos %v201
      %v203 = vstv %s202
      %v204 = vmul.f32 %v203, 0.00048828125
      %vm205 = vcmp.eq.s32.totalorder %v174, 1
      %v206 = vsel %vm205, %v204, %v190
      %v207 = vld [vmem:[#allocation4] sm:$0xff]
      %v208 = vld [vmem:[#allocation4 + $0x8] sm:$0xff]
      %v209 = vadd.f32 %v207, %v208
      %210 = vadd.xlane.f32.xlu0 %v209
      %v211 = vpop.xlane.xlu0 %210
      %v212 = vrot.slane %v211, 4
      %v213 = vadd.f32 %v211, %v212
      %v214 = vrot.slane %v213, 2
      %v215 = vadd.f32 %v213, %v214
      %v216 = vrot.slane %v215, 1
      %v217 = vadd.f32 %v215, %v216
      %s218 = vtos %v217
      %v219 = vstv %s218
      %v220 = vmul.f32 %v219, 0.00048828125
      %vm221 = vcmp.eq.s32.totalorder %v174, 2
      %v222 = vsel %vm221, %v220, %v206
      %v223 = vld [vmem:[#allocation5] sm:$0xff]
      %v224 = vld [vmem:[#allocation5 + $0x8] sm:$0xff]
      %v225 = vadd.f32 %v223, %v224
      %226 = vadd.xlane.f32.xlu0 %v225
      %v227 = vpop.xlane.xlu0 %226
      %v228 = vrot.slane %v227, 4
      %v229 = vadd.f32 %v227, %v228
      %v230 = vrot.slane %v229, 2
      %v231 = vadd.f32 %v229, %v230
      %v232 = vrot.slane %v231, 1
      %v233 = vadd.f32 %v231, %v232
      %s234 = vtos %v233
      %v235 = vstv %s234
      %v236 = vmul.f32 %v235, 0.00048828125
      %vm237 = vcmp.eq.s32.totalorder %v174, 3
      %v238 = vsel %vm237, %v236, %v222
      %v239 = vld [vmem:[#allocation6] sm:$0xff]
      %v240 = vld [vmem:[#allocation6 + $0x8] sm:$0xff]
      %v241 = vadd.f32 %v239, %v240
      %242 = vadd.xlane.f32.xlu0 %v241
      %v243 = vpop.xlane.xlu0 %242
      %v244 = vrot.slane %v243, 4
      %v245 = vadd.f32 %v243, %v244
      %v246 = vrot.slane %v245, 2
      %v247 = vadd.f32 %v245, %v246
      %v248 = vrot.slane %v247, 1
      %v249 = vadd.f32 %v247, %v248
      %s250 = vtos %v249
      %v251 = vstv %s250
      %v252 = vmul.f32 %v251, 0.00048828125
      %vm253 = vcmp.eq.s32.totalorder %v174, 4
      %v254 = vsel %vm253, %v252, %v238
      %v255 = vld [vmem:[#allocation7] sm:$0xff]
      %v256 = vld [vmem:[#allocation7 + $0x8] sm:$0xff]
      %v257 = vadd.f32 %v255, %v256
      %258 = vadd.xlane.f32.xlu0 %v257
      %v259 = vpop.xlane.xlu0 %258
      %v260 = vrot.slane %v259, 4
      %v261 = vadd.f32 %v259, %v260
      %v262 = vrot.slane %v261, 2
      %v263 = vadd.f32 %v261, %v262
      %v264 = vrot.slane %v263, 1
      %v265 = vadd.f32 %v263, %v264
      %s266 = vtos %v265
      %v267 = vstv %s266
      %v268 = vmul.f32 %v267, 0.00048828125
      %vm269 = vcmp.eq.s32.totalorder %v174, 5
      %v270 = vsel %vm269, %v268, %v254
      %271 = vst [vmem:[#allocation19] sm:$0x1] %v270
    $region57: #{tpu_custom_call.1} parent=1 // pred_fallthru
      _
    // Predicated region
    $region58: #{tpu_custom_call.1} parent=1 // pred_check
      _
    $region59: #{tpu_custom_call.1} parent=1 // pred_check_branch
      %273 = sbr.rel (0) target = $region61
    $region60: #{tpu_custom_call.1} parent=1 // pred_region
      %s275 = ssub.s32 16, 16
      %276 = vsyncadd [#allocation10], %s275
      %s278 = sshll.u32 [#allocation19], 4
      %s279 = int_to_ptr.vmem [resolvable:$true] %s278
      %281 = dma.vmem_to_hbm [thread:$0]  %s279, 16, %s6, [#allocation10]
    $region61: #{tpu_custom_call.1} parent=1 // pred_fallthru
      _
    // Predicated region
    $region62: #{tpu_custom_call.1} parent=1 // pred_check
      _
    $region63: #{tpu_custom_call.1} parent=1 // pred_check_branch
      %283 = sbr.rel (0) target = $region65
    $region64: #{tpu_custom_call.1} parent=1 // pred_region
      %284 = dma.done [#allocation10], 16
    $region65: #{tpu_custom_call.1} parent=1 // pred_fallthru
      _
    %285 = vsyncpa [#allocation9], 1
    %286 = vsyncpa [#allocation12], 1
    %287 = vsyncpa [#allocation15], 1
    %288 = vsyncpa [#allocation18], 1
    %289 = vsyncpa [#allocation10], 1

</llo_original>
